<compile_context>
chip_gen: v7x
topology: tpu7x:2x2x1
jax: 0.10.0
libtpu: 0.0.40
codegen_flags: <defaults>
</compile_context>

<pallas_src>
import functools

import jax
import jax.numpy as jnp
from jax.experimental import pallas as pl
from jax.experimental.pallas import tpu as pltpu

# ----------------------------------------------------------------------------
# Model config (scaled-down UNet2DModel hyper-parameters; all lane-friendly)
# ----------------------------------------------------------------------------
BLOCK_OUT = (128, 128, 256, 256, 256)   # scaled from (128, 256, 512, 1024, 2048)
LAYERS_PER_BLOCK = 2
NORM_GROUPS = 32                        # matches the original module
ATTN_HEAD_DIM = 8
NORM_EPS = 1e-5

ACT_DTYPE = jnp.bfloat16                # activation storage dtype
VMEM_LIMIT = 32 * 1024 * 1024           # safe on v5e / v6e / v7x


# ----------------------------------------------------------------------------
# Pallas kernel 1: fused matmul + bias (+ SiLU) epilogue, K collapsed
# ----------------------------------------------------------------------------
def _mm_bias_act_kernel(a_ref, w_ref, b_ref, o_ref, *, act):
    acc = jnp.dot(a_ref[...], w_ref[...], preferred_element_type=jnp.float32)
    acc = acc + b_ref[...]                       # (1, tn) broadcasts over rows
    if act:
        acc = acc * jax.nn.sigmoid(acc)          # fused SiLU (EUP handles exp)
    o_ref[...] = acc.astype(o_ref.dtype)


def _pick_tm(m):
    # biggest 128-multiple tile that still gives >=2 grid steps (megacore),
    # otherwise the full M extent (always a legal block: equals full dim).
    for t in (256, 128):
        if m % t == 0 and m > t:
            return t
    return m


def matmul_bias_act(a, w, b, act=False):
    """(M,K) @ (K,N) + bias, optional fused SiLU.  bf16 MXU inputs, f32 acc."""
    M, K = a.shape
    K2, N = w.shape
    assert K == K2, (a.shape, w.shape)
    tm = _pick_tm(M)
    tn = 128 if N % 128 == 0 else N
    return pl.pallas_call(
        functools.partial(_mm_bias_act_kernel, act=act),
        out_shape=jax.ShapeDtypeStruct((M, N), ACT_DTYPE),
        grid_spec=pltpu.PrefetchScalarGridSpec(
            num_scalar_prefetch=0,
            grid=(M // tm, N // tn),
            in_specs=[pl.BlockSpec((tm, K), lambda i, j: (i, 0)),
                      pl.BlockSpec((K, tn), lambda i, j: (0, j)),
                      pl.BlockSpec((1, tn), lambda i, j: (0, j))],
            out_specs=pl.BlockSpec((tm, tn), lambda i, j: (i, j))),
        compiler_params=pltpu.CompilerParams(
            dimension_semantics=("parallel", "parallel"),
            vmem_limit_bytes=VMEM_LIMIT),
    )(a.astype(jnp.bfloat16), w, b)


# ----------------------------------------------------------------------------
# Pallas kernel 2: fused GroupNorm (+ affine, + optional SiLU), channels-last
# ----------------------------------------------------------------------------
def _gn_silu_kernel(x_ref, g_ref, b_ref, o_ref, *, hw, groups, eps, act):
    x = x_ref[...].astype(jnp.float32)            # (R, C), R = B*H*W
    R, C = x.shape
    bsz = R // hw
    gs = C // groups
    BP = ((bsz + 7) // 8) * 8
    GP = ((groups + 127) // 128) * 128

    # one-hot "row -> sample" and "channel -> group" matrices (VPU iota only)
    r_i = jax.lax.broadcasted_iota(jnp.int32, (R, BP), 0)
    b_i = jax.lax.broadcasted_iota(jnp.int32, (R, BP), 1)
    S = (r_i // hw == b_i).astype(jnp.float32)            # (R, BP)
    b_j = jax.lax.broadcasted_iota(jnp.int32, (BP, R), 0)
    r_j = jax.lax.broadcasted_iota(jnp.int32, (BP, R), 1)
    ST = (r_j // hw == b_j).astype(jnp.float32)           # (BP, R)
    c_i = jax.lax.broadcasted_iota(jnp.int32, (C, GP), 0)
    g_i = jax.lax.broadcasted_iota(jnp.int32, (C, GP), 1)
    A = (c_i // gs == g_i).astype(jnp.float32)            # (C, GP)
    g_j = jax.lax.broadcasted_iota(jnp.int32, (GP, C), 0)
    c_j = jax.lax.broadcasted_iota(jnp.int32, (GP, C), 1)
    AT = (c_j // gs == g_j).astype(jnp.float32)           # (GP, C)

    n = float(gs * hw)
    cs = jnp.dot(ST, x, preferred_element_type=jnp.float32)        # (BP, C)
    cs2 = jnp.dot(ST, x * x, preferred_element_type=jnp.float32)   # (BP, C)
    mean_g = jnp.dot(cs, A, preferred_element_type=jnp.float32) / n
    msq_g = jnp.dot(cs2, A, preferred_element_type=jnp.float32) / n
    var_g = jnp.maximum(msq_g - mean_g * mean_g, 0.0)
    inv_g = jax.lax.rsqrt(var_g + eps)

    mean_rc = jnp.dot(S, jnp.dot(mean_g, AT, preferred_element_type=jnp.float32),
                      preferred_element_type=jnp.float32)
    inv_rc = jnp.dot(S, jnp.dot(inv_g, AT, preferred_element_type=jnp.float32),
                     preferred_element_type=jnp.float32)

    y = (x - mean_rc) * inv_rc * g_ref[...] + b_ref[...]
    if act:
        y = y * jax.nn.sigmoid(y)                          # fused SiLU
    o_ref[...] = y.astype(o_ref.dtype)


@functools.partial(jax.jit, static_argnames=("groups", "act"))
def group_norm_act(x, gamma, beta, *, groups, act=False):
    """GroupNorm over channels-last x (B, ..., C); affine (+SiLU) fused."""
    shp = x.shape
    C = shp[-1]
    hw = 1
    for d in shp[1:-1]:
        hw *= d
    xr = x.reshape(shp[0] * hw, C)
    out = pl.pallas_call(
        functools.partial(_gn_silu_kernel, hw=hw, groups=groups,
                          eps=NORM_EPS, act=act),
        out_shape=jax.ShapeDtypeStruct((shp[0] * hw, C), ACT_DTYPE),
        compiler_params=pltpu.CompilerParams(vmem_limit_bytes=VMEM_LIMIT),
    )(xr, gamma, beta)
    return out.reshape(shp)


# ----------------------------------------------------------------------------
# Conv / Linear wrappers (jitted per shape; hot path is the Pallas matmul)
# ----------------------------------------------------------------------------
@functools.partial(jax.jit, static_argnames=("k", "stride", "padding", "act"))
def conv2d(x, w, b, *, k, stride=1, padding=1, act=False):
    """NHWC conv via lane-dense in-graph im2col + fused Pallas matmul.

    x: (B, H, W, Cin) bf16;  w (pre-packed): (k*k*Cin, Cout) bf16;  b: (1, Cout) f32.
    """
    # TODO(synk): im2col could be pulled into the kernel via overlapping input
    # windows / shifted-matmul accumulation; kept as lane-dense slices for now.
    B, H, W, C = x.shape
    Cout = w.shape[1]
    if k == 1:
        out = matmul_bias_act(x.reshape(B * H * W, C), w, b, act=act)
        return out.reshape(B, H, W, Cout)
    xp = jnp.pad(x, ((0, 0), (padding, padding), (padding, padding), (0, 0)))
    Ho = (H + 2 * padding - k) // stride + 1
    Wo = (W + 2 * padding - k) // stride + 1
    cols = [xp[:, i:i + stride * (Ho - 1) + 1:stride,
               j:j + stride * (Wo - 1) + 1:stride, :]
            for i in range(k) for j in range(k)]
    patches = jnp.concatenate(cols, axis=-1)              # (B, Ho, Wo, k*k*Cin)
    out = matmul_bias_act(patches.reshape(B * Ho * Wo, k * k * C), w, b, act=act)
    return out.reshape(B, Ho, Wo, Cout)


@functools.partial(jax.jit, static_argnames=("act",))
def linear(x, w, b, *, act=False):
    """x (..., Cin) @ w (Cin, Cout) + b, optional fused SiLU."""
    lead = x.shape[:-1]
    out = matmul_bias_act(x.reshape(-1, x.shape[-1]), w, b, act=act)
    return out.reshape(*lead, w.shape[1])


# ----------------------------------------------------------------------------
# Parameter construction (weights generated directly in packed layouts)
# ----------------------------------------------------------------------------
class ParamGen:
    def __init__(self, key):
        self.key = key
        self.count = 0

    def take(self, shape, scale=0.05):
        self.count += 1
        k = jax.random.fold_in(self.key, self.count)
        return scale * jax.random.normal(k, shape, jnp.float32)


def init_conv(gen, cin, cout, k):
    # im2col-packed weight: rows ordered (kh, kw, cin), cast once to bf16.
    return {"w": gen.take((k * k * cin, cout)).astype(ACT_DTYPE),
            "b": jnp.zeros((1, cout), jnp.float32)}


def init_linear(gen, cin, cout):
    return {"w": gen.take((cin, cout)).astype(ACT_DTYPE),
            "b": jnp.zeros((1, cout), jnp.float32)}


def init_groupnorm(c):
    return {"g": jnp.ones((1, c), jnp.float32), "b": jnp.zeros((1, c), jnp.float32)}


def init_resnet(gen, cin, cout, temb_dim):
    p = {"norm1": init_groupnorm(cin),
         "conv1": init_conv(gen, cin, cout, 3),
         "temb": init_linear(gen, temb_dim, cout),
         "norm2": init_groupnorm(cout),
         "conv2": init_conv(gen, cout, cout, 3)}
    if cin != cout:
        p["shortcut"] = init_conv(gen, cin, cout, 1)
    return p


def init_attention(gen, c):
    return {"gn": init_groupnorm(c),
            "qkv": init_linear(gen, c, 3 * c),   # fused q/k/v projection
            "o": init_linear(gen, c, c)}


def init_unet(gen, in_channels):
    temb_dim = BLOCK_OUT[0] * 4
    params = {"conv_in": init_conv(gen, in_channels, BLOCK_OUT[0], 3),
              "time_1": init_linear(gen, BLOCK_OUT[0], temb_dim),
              "time_2": init_linear(gen, temb_dim, temb_dim)}
    # down blocks (DownBlock2D x5)
    down = []
    out_ch = BLOCK_OUT[0]
    for i, ch in enumerate(BLOCK_OUT):
        in_ch, out_ch = out_ch, ch
        is_final = i == len(BLOCK_OUT) - 1
        resnets = [init_resnet(gen, in_ch if j == 0 else out_ch, out_ch, temb_dim)
                   for j in range(LAYERS_PER_BLOCK)]
        blk = {"resnets": resnets}
        if not is_final:
            blk["down_conv"] = init_conv(gen, out_ch, out_ch, 3)
        down.append(blk)
    params["down"] = down
    # mid block
    mid_ch = BLOCK_OUT[-1]
    params["mid"] = {"resnet1": init_resnet(gen, mid_ch, mid_ch, temb_dim),
                     "attn": init_attention(gen, mid_ch),
                     "resnet2": init_resnet(gen, mid_ch, mid_ch, temb_dim)}
    # up blocks (UpBlock2D x5)
    up = []
    rev = list(reversed(BLOCK_OUT))
    output_channel = rev[0]
    for i in range(len(BLOCK_OUT)):
        prev_output_channel = output_channel
        output_channel = rev[i]
        input_channel = rev[min(i + 1, len(BLOCK_OUT) - 1)]
        is_final = i == len(BLOCK_OUT) - 1
        resnets = []
        for j in range(LAYERS_PER_BLOCK + 1):
            res_skip = input_channel if j == LAYERS_PER_BLOCK else output_channel
            res_in = prev_output_channel if j == 0 else output_channel
            resnets.append(init_resnet(gen, res_in + res_skip, output_channel, temb_dim))
        blk = {"resnets": resnets}
        if not is_final:
            blk["up_conv"] = init_conv(gen, output_channel, output_channel, 3)
        up.append(blk)
    params["up"] = up
    params["norm_out"] = init_groupnorm(BLOCK_OUT[0])
    params["conv_out"] = init_conv(gen, BLOCK_OUT[0], in_channels, 3)
    return params


# ----------------------------------------------------------------------------
# Forward pass
# ----------------------------------------------------------------------------
def resnet_block(p, x, emb_silu):
    h = group_norm_act(x, p["norm1"]["g"], p["norm1"]["b"],
                       groups=NORM_GROUPS, act=True)           # GN + SiLU fused
    h = conv2d(h, p["conv1"]["w"], p["conv1"]["b"], k=3, stride=1, padding=1)
    t = linear(emb_silu, p["temb"]["w"], p["temb"]["b"])       # (B, cout)
    # TODO(synk): per-sample temb bias could also be fused into the conv epilogue.
    h = h + t[:, None, None, :]
    h = group_norm_act(h, p["norm2"]["g"], p["norm2"]["b"],
                       groups=NORM_GROUPS, act=True)
    h = conv2d(h, p["conv2"]["w"], p["conv2"]["b"], k=3, stride=1, padding=1)
    if "shortcut" in p:
        x = conv2d(x, p["shortcut"]["w"], p["shortcut"]["b"], k=1, stride=1, padding=0)
    return x + h            # output_scale_factor == 1


def attention_block(p, x):
    B, H, W, C = x.shape
    heads = C // ATTN_HEAD_DIM
    dh = ATTN_HEAD_DIM
    residual = x
    hn = group_norm_act(x, p["gn"]["g"], p["gn"]["b"], groups=NORM_GROUPS, act=False)
    hn = hn.reshape(B, H * W, C)
    qkv = linear(hn, p["qkv"]["w"], p["qkv"]["b"])             # fused q/k/v matmul
    q, k, v = jnp.split(qkv.astype(jnp.float32), 3, axis=-1)
    S = H * W

    def split_heads(t):
        return t.reshape(B, S, heads, dh).transpose(0, 2, 1, 3)

    q, k, v = split_heads(q), split_heads(k), split_heads(v)
    # TODO(synk): S == 1 at the mid block here, so softmax/attention math is
    # trivially small and kept in JAX glue rather than a dedicated kernel.
    scores = jnp.einsum("bhqd,bhkd->bhqk", q, k) / jnp.sqrt(jnp.float32(dh))
    attn = jax.nn.softmax(scores, axis=-1)
    out = jnp.einsum("bhqk,bhkd->bhqd", attn, v)
    out = out.transpose(0, 2, 1, 3).reshape(B, S, C).astype(ACT_DTYPE)
    out = linear(out, p["o"]["w"], p["o"]["b"])
    return out.reshape(B, H, W, C) + residual


def timestep_embedding(timesteps, dim):
    """diffusers get_timestep_embedding, flip_sin_to_cos=True, freq_shift=0."""
    half = dim // 2
    exponent = -jnp.log(10000.0) * jnp.arange(half, dtype=jnp.float32) / half
    freqs = jnp.exp(exponent)
    args = timesteps.astype(jnp.float32)[:, None] * freqs[None, :]
    emb = jnp.concatenate([jnp.sin(args), jnp.cos(args)], axis=-1)
    return jnp.concatenate([emb[:, half:], emb[:, :half]], axis=-1)   # [cos, sin]


def unet_forward(params, sample, timestep):
    B = sample.shape[0]
    # NCHW (PyTorch interface) -> NHWC bf16 for the whole network.
    x = jnp.transpose(sample, (0, 2, 3, 1)).astype(ACT_DTYPE)

    timesteps = jnp.full((B,), timestep, jnp.float32)
    t_emb = timestep_embedding(timesteps, BLOCK_OUT[0]).astype(ACT_DTYPE)
    emb = linear(t_emb, params["time_1"]["w"], params["time_1"]["b"], act=True)
    emb = linear(emb, params["time_2"]["w"], params["time_2"]["b"])
    emb_f = emb.astype(jnp.float32)
    emb_silu = (emb_f * jax.nn.sigmoid(emb_f)).astype(ACT_DTYPE)   # SiLU once, reused

    h = conv2d(x, params["conv_in"]["w"], params["conv_in"]["b"], k=3, stride=1, padding=1)
    res_stack = [h]
    # down path
    for blk in params["down"]:
        for rp in blk["resnets"]:
            h = resnet_block(rp, h, emb_silu)
            res_stack.append(h)
        if "down_conv" in blk:
            h = conv2d(h, blk["down_conv"]["w"], blk["down_conv"]["b"],
                       k=3, stride=2, padding=1)
            res_stack.append(h)
    # mid
    h = resnet_block(params["mid"]["resnet1"], h, emb_silu)
    h = attention_block(params["mid"]["attn"], h)
    h = resnet_block(params["mid"]["resnet2"], h, emb_silu)
    # up path
    for blk in params["up"]:
        for rp in blk["resnets"]:
            res = res_stack.pop()
            h = jnp.concatenate([h, res], axis=-1)     # channels-last skip concat
            h = resnet_block(rp, h, emb_silu)
        if "up_conv" in blk:
            # TODO(synk): nearest-upsample could be folded into the conv's im2col
            # index pattern; kept as a cheap lane-dense repeat for now.
            h = jnp.repeat(jnp.repeat(h, 2, axis=1), 2, axis=2)
            h = conv2d(h, blk["up_conv"]["w"], blk["up_conv"]["b"],
                       k=3, stride=1, padding=1)
    # out
    h = group_norm_act(h, params["norm_out"]["g"], params["norm_out"]["b"],
                       groups=NORM_GROUPS, act=True)
    h = conv2d(h, params["conv_out"]["w"], params["conv_out"]["b"],
               k=3, stride=1, padding=1)
    return jnp.transpose(h, (0, 3, 1, 2)).astype(jnp.float32)   # back to NCHW f32


# ------------------------------- Diffusion wrap ------------------------------
class DiffusionPallas:
    """Pallas port of Diffusion (is_intrinsic=True path returns UNet sample)."""

    def __init__(self, sample_size, in_channels, is_intrinsic=True,
                 is_eval=False, key=None):
        assert is_intrinsic, (
            # TODO(synk): non-intrinsic branch (ConvTranspose2d up/down stacks)
            # not implemented; the default module config is is_intrinsic=True.
            "only the is_intrinsic=True path is implemented")
        self.is_eval = is_eval
        self.sample_size = sample_size
        gen = ParamGen(key if key is not None else jax.random.PRNGKey(42))
        self.params = init_unet(gen, in_channels)

    def __call__(self, noisy_x, timestep):
        return unet_forward(self.params, noisy_x, timestep)


# ----------------------------------------------------------------------------
if __name__ == "__main__":
    key = jax.random.PRNGKey(0)
    kx, kp = jax.random.split(key)
    B, C, S = 2, 4, 16
    x = jax.random.normal(kx, (B, C, S, S), jnp.float32)
    timestep = jnp.asarray(10, jnp.int32)

    model = DiffusionPallas(sample_size=S, in_channels=C, key=kp)
    out = model(x, timestep)
    out = jax.block_until_ready(out)

    assert out.shape == (B, C, S, S), out.shape
    assert bool(jnp.all(jnp.isfinite(out)))
    print("KERNEL_OK")
</pallas_src>

<mosaic_0001>
module attributes {stable_mosaic.version = 11 : i64} {
  func.func @_mm_bias_act_kernel(%arg0: i32, %arg1: i32, %arg2: memref<2x128xbf16, #tpu.memory_space<vmem>>, %arg3: memref<128x128xbf16, #tpu.memory_space<vmem>>, %arg4: memref<1x128xf32, #tpu.memory_space<vmem>>, %arg5: memref<2x128xbf16, #tpu.memory_space<vmem>>) attributes {dimension_semantics = [#tpu.dimension_semantics<parallel>, #tpu.dimension_semantics<parallel>], iteration_bounds = array<i64: 1, 4>, scalar_prefetch = 0 : i64, scratch_operands = 0 : i64, tpu.core_type = #tpu.core_type<tc>, window_params = [{transform_indices = @transform_0, window_bounds = array<i64: 2, 128>}, {transform_indices = @transform_1, window_bounds = array<i64: 128, 128>}, {transform_indices = @transform_2, window_bounds = array<i64: 1, 128>}, {transform_indices = @transform_3, window_bounds = array<i64: 2, 128>}]} {
    %c0 = arith.constant 0 : index
    %c0_0 = arith.constant 0 : index
    %0 = vector.load %arg2[%c0, %c0_0] : memref<2x128xbf16, #tpu.memory_space<vmem>>, vector<2x128xbf16>
    %c0_1 = arith.constant 0 : index
    %c0_2 = arith.constant 0 : index
    %1 = vector.load %arg3[%c0_1, %c0_2] : memref<128x128xbf16, #tpu.memory_space<vmem>>, vector<128x128xbf16>
    %cst = arith.constant dense<0.000000e+00> : vector<2x128xf32>
    %2 = tpu.matmul %0, %1, %cst {dimension_numbers = #tpu.dot_dimension_numbers<[1], [0], [0], [1], [0, 0, 1, 1], [], []>} : vector<2x128xbf16>, vector<128x128xbf16>, vector<2x128xf32> -> vector<2x128xf32>
    %c0_3 = arith.constant 0 : index
    %c0_4 = arith.constant 0 : index
    %3 = vector.load %arg4[%c0_3, %c0_4] : memref<1x128xf32, #tpu.memory_space<vmem>>, vector<1x128xf32>
    %4 = vector.broadcast %3 : vector<1x128xf32> to vector<2x128xf32>
    %5 = arith.addf %2, %4 : vector<2x128xf32>
    %6 = arith.negf %5 : vector<2x128xf32>
    %7 = math.exp %6 : vector<2x128xf32>
    %cst_5 = arith.constant 1.000000e+00 : f32
    %8 = vector.broadcast %cst_5 : f32 to vector<2x128xf32>
    %9 = arith.addf %8, %7 : vector<2x128xf32>
    %10 = arith.divf %8, %9 : vector<2x128xf32>
    %11 = arith.mulf %5, %10 : vector<2x128xf32>
    %12 = arith.truncf %11 : vector<2x128xf32> to vector<2x128xbf16>
    %c0_6 = arith.constant 0 : index
    %c0_7 = arith.constant 0 : index
    %13 = vector.load %arg5[%c0_6, %c0_7] : memref<2x128xbf16, #tpu.memory_space<vmem>>, vector<2x128xbf16>
    tpu.vector_store %arg5[%c0_6, %c0_7], %12 {strides = array<i32>} : memref<2x128xbf16, #tpu.memory_space<vmem>>, vector<2x128xbf16>,
    return
  }
  func.func @transform_0(%arg0: i32, %arg1: i32) -> (i32, i32) {
    %c0_i32 = arith.constant 0 : i32
    %c0_i32_0 = arith.constant 0 : i32
    return %arg0, %c0_i32 : i32, i32
  }
  func.func @transform_1(%arg0: i32, %arg1: i32) -> (i32, i32) {
    %c0_i32 = arith.constant 0 : i32
    %c0_i32_0 = arith.constant 0 : i32
    return %c0_i32, %arg1 : i32, i32
  }
  func.func @transform_2(%arg0: i32, %arg1: i32) -> (i32, i32) {
    %c0_i32 = arith.constant 0 : i32
    %c0_i32_0 = arith.constant 0 : i32
    return %c0_i32, %arg1 : i32, i32
  }
  func.func @transform_3(%arg0: i32, %arg1: i32) -> (i32, i32) {
    %c0_i32 = arith.constant 0 : i32
    return %arg0, %arg1 : i32, i32
  }
}

</mosaic_0001>

<llo_original>
// kernel: linear.1
$region0: #{linear.1}
  #allocation0 [shape = 'u32[]', space=smem, size = 0x4, offset = 0x4, fixed_abs, tag = 'smem constant byte address 0x4 - core index']
  #allocation1 [shape = 'u32[144,128]{1,0:T(1,128)}', space=vmem, size = 0x12000, scoped, tag = 'internal scratch']
  %s0 = inlined_call_operand.hbm [shape: bf16[2,128], index: 0, kind: input, shape index: {}]
  %s1 = inlined_call_operand.hbm [shape: bf16[128,512], index: 1, kind: input, shape index: {}]
  %s2 = inlined_call_operand.vmem [shape: f32[1,512], index: 2, kind: input, shape index: {}]
  %s3 = inlined_call_operand.hbm [shape: bf16[2,512], index: 3, kind: output, shape index: {}]
  %s4 = sld [smem:[#allocation0]]
  $region53: #{linear.1} parent=0
    _
  %s6 = ssub.s32 1, %s4
  %s7 = scalar_select 0, %s6, %s4
  $region1: #{linear.1} parent=0
    #allocation2 [shape = 'u8[512]{0}', space=vmem, size = 0x400, scoped, tag = 'input window, operand 0, single buffered']
    #allocation3 [shape = 's32[2]{0}', space=sflag, size = 0x8, scoped, tag = 'scoped memory for linear.1']
    #allocation4 [shape = 's32[2]{0}', space=sflag, size = 0x8, scoped, tag = 'scoped memory for linear.1']
    #allocation5 [shape = 'u8[65536]{0}', space=vmem, size = 0x10000, scoped, tag = 'input window, operand 1']
    #allocation6 [shape = 's32[2]{0}', space=sflag, size = 0x8, scoped, tag = 'scoped memory for linear.1']
    #allocation7 [shape = 'u8[1024]{0}', space=vmem, size = 0x400, scoped, tag = 'output window, operand 0']
    %8 = vsyncpa [#allocation3], 0
    %9 = vsyncpa [#allocation6], 0
    %s10 = scalar_lea.sflag [#allocation6], 1
    %11 = vsyncpa %s10, 0
    %12 = vsyncpa [#allocation4], 0
    %s13 = scalar_lea.sflag [#allocation4], 1
    %14 = vsyncpa %s13, 0
    loop: start=0, step=1, limit=6
    $region2: #{linear.1} parent=1 // loop_pre_header
      _
    $region3: #{linear.1} parent=1 // loop_header
      %s16 = sphi 0, %s20
      %p17 = scmp.ge.s32.totalorder %s16, 6
      %s23 = sphi 0, %s35
      %s24 = sphi 0, %s31
      %s25 = sphi 0, %s23
      %s26 = sphi 0, %s24
      %s27 = sphi 0, %s25
      %s28 = sphi 0, %s26
      %s38 = sphi 0, %s40
      %s41 = sphi 0, %s38
      %s42 = sphi 0, %s41
      %s58 = sphi 0, %s42
      %s64 = sphi 0, %s66
      %s67 = sphi 0, %s64
      %s68 = sphi 0, %s67
      %s84 = sphi 0, %s68
      %s90 = sphi 0, %s92
      %s93 = sphi 0, %s90
      %s94 = sphi 0, %s93
      %s110 = sphi 0, %s94
      %s118 = sphi 0, %s120
      %s121 = sphi 0, %s118
      %s122 = sphi 0, %s121
      %s138 = sphi 0, %s122
    $region4: #{linear.1} parent=1 // loop_header_branch
      %19 = sbr.rel (%p17) target = $region8
    $region5: #{linear.1} parent=1 // loop_body
      %s21 = ssub.s32 %s16, 1
      %s22 = ssub.s32 %s16, 2
      %s29 = sadd.s32 1, %s24
      %p30 = scmp.ge.s32.totalorder %s29, 4
      %s31 = scalar_select %p30, 0, %s29
      %s32 = sadd.s32 1, %s23
      %s33 = scalar_select %p30, %s32, %s23
      %p34 = scmp.ge.s32.totalorder %s33, 1
      %s35 = scalar_select %p34, 0, %s33
      %s36 = ssub.s32 %s23, %s35
      %p37 = scmp.eq.s32.totalorder %s36, 0
      %s39 = sadd.s32 %s38, 1
      %s40 = scalar_select %p37, %s38, %s39
      %p43 = pneg %p37
      %p44 = scmp.eq.s32.totalorder %s16, 3
      %p45 = por %p43, %p44
      %p46 = scmp.ne.s32.totalorder %s38, %s41
      %p47 = scmp.eq.s32.totalorder %s16, 0
      %p48 = por %p46, %p47
      %p49 = scmp.ne.s32.totalorder %s38, %s41
      %p50 = scmp.eq.s32.totalorder %s21, 3
      %p51 = por %p49, %p50
      %p52 = scmp.ne.s32.totalorder %s41, %s42
      %p53 = scmp.eq.s32.totalorder %s21, 0
      %p54 = por %p52, %p53
      %p55 = scmp.ne.s32.totalorder %s41, %s42
      %p56 = scmp.eq.s32.totalorder %s22, 3
      %p57 = por %p55, %p56
      %p59 = scmp.ne.s32.totalorder %s42, %s58
      %p60 = scmp.eq.s32.totalorder %s22, 0
      %p61 = por %p59, %p60
      %s62 = ssub.s32 %s24, %s31
      %p63 = scmp.eq.s32.totalorder %s62, 0
      %s65 = sadd.s32 %s64, 1
      %s66 = scalar_select %p63, %s64, %s65
      %p69 = pneg %p63
      %p70 = scmp.eq.s32.totalorder %s16, 3
      %p71 = por %p69, %p70
      %p72 = scmp.ne.s32.totalorder %s64, %s67
      %p73 = scmp.eq.s32.totalorder %s16, 0
      %p74 = por %p72, %p73
      %p75 = scmp.ne.s32.totalorder %s64, %s67
      %p76 = scmp.eq.s32.totalorder %s21, 3
      %p77 = por %p75, %p76
      %p78 = scmp.ne.s32.totalorder %s67, %s68
      %p79 = scmp.eq.s32.totalorder %s21, 0
      %p80 = por %p78, %p79
      %p81 = scmp.ne.s32.totalorder %s67, %s68
      %p82 = scmp.eq.s32.totalorder %s22, 3
      %p83 = por %p81, %p82
      %p85 = scmp.ne.s32.totalorder %s68, %s84
      %p86 = scmp.eq.s32.totalorder %s22, 0
      %p87 = por %p85, %p86
      %s88 = ssub.s32 %s24, %s31
      %p89 = scmp.eq.s32.totalorder %s88, 0
      %s91 = sadd.s32 %s90, 1
      %s92 = scalar_select %p89, %s90, %s91
      %p95 = pneg %p89
      %p96 = scmp.eq.s32.totalorder %s16, 3
      %p97 = por %p95, %p96
      %p98 = scmp.ne.s32.totalorder %s90, %s93
      %p99 = scmp.eq.s32.totalorder %s16, 0
      %p100 = por %p98, %p99
      %p101 = scmp.ne.s32.totalorder %s90, %s93
      %p102 = scmp.eq.s32.totalorder %s21, 3
      %p103 = por %p101, %p102
      %p104 = scmp.ne.s32.totalorder %s93, %s94
      %p105 = scmp.eq.s32.totalorder %s21, 0
      %p106 = por %p104, %p105
      %p107 = scmp.ne.s32.totalorder %s93, %s94
      %p108 = scmp.eq.s32.totalorder %s22, 3
      %p109 = por %p107, %p108
      %p111 = scmp.ne.s32.totalorder %s94, %s110
      %p112 = scmp.eq.s32.totalorder %s22, 0
      %p113 = por %p111, %p112
      %s114 = ssub.s32 %s23, %s35
      %s115 = ssub.s32 %s24, %s31
      %s116 = sor.u32 %s114, %s115
      %p117 = scmp.eq.s32.totalorder %s116, 0
      %s119 = sadd.s32 %s118, 1
      %s120 = scalar_select %p117, %s118, %s119
      %p123 = pneg %p117
      %p124 = scmp.eq.s32.totalorder %s16, 3
      %p125 = por %p123, %p124
      %p126 = scmp.ne.s32.totalorder %s118, %s121
      %p127 = scmp.eq.s32.totalorder %s16, 0
      %p128 = por %p126, %p127
      %p129 = scmp.ne.s32.totalorder %s118, %s121
      %p130 = scmp.eq.s32.totalorder %s21, 3
      %p131 = por %p129, %p130
      %p132 = scmp.ne.s32.totalorder %s121, %s122
      %p133 = scmp.eq.s32.totalorder %s21, 0
      %p134 = por %p132, %p133
      %p135 = scmp.ne.s32.totalorder %s121, %s122
      %p136 = scmp.eq.s32.totalorder %s22, 3
      %p137 = por %p135, %p136
      %p139 = scmp.ne.s32.totalorder %s122, %s138
      %p140 = scmp.eq.s32.totalorder %s22, 0
      %p141 = por %p139, %p140
      %p142 = scmp.le.s32.totalorder 1, %s16
      %p143 = scmp.lt.s32.totalorder %s16, 5
      %p144 = pnand %p142, %p143
      %p145 = pneg %p144
      // Predicated region
      $region9: #{linear.1} parent=5 // pred_check
        _
      $region10: #{linear.1} parent=5 // pred_check_branch
        %147 = sbr.rel (%p144) target = $region12
      $region11: #{linear.1} parent=5 // pred_region
        %s148 = ssub.s32 %s16, 1
        // Predicated region
        $region13: #{linear.1} parent=11 // pred_check
          %p149 = pneg %p54
        $region14: #{linear.1} parent=11 // pred_check_branch
          %151 = sbr.rel (%p149) target = $region16
        $region15: #{linear.1} parent=11 // pred_region
          %s153 = ssub.s32 16, 16
          %154 = vsyncadd [#allocation3], %s153
          %s155 = smul.addr %s25, 16
          %s156 = scalar_lea.hbm %s0, %s155
          %s158 = sshll.u32 [#allocation2], 4
          %s159 = int_to_ptr.vmem [resolvable:$true] %s158
          %161 = dma.hbm_to_vmem [thread:$0]  %s156, 16, %s159, [#allocation3]
        $region16: #{linear.1} parent=11 // pred_fallthru
          _
      $region12: #{linear.1} parent=5 // pred_fallthru
        _
      %p162 = scmp.lt.s32.totalorder %s16, 4
      // Predicated region
      $region17: #{linear.1} parent=5 // pred_check
        %p163 = pneg %p162
      $region18: #{linear.1} parent=5 // pred_check_branch
        %165 = sbr.rel (%p163) target = $region20
      $region19: #{linear.1} parent=5 // pred_region
        // Predicated region
        $region21: #{linear.1} parent=19 // pred_check
          %p166 = pneg %p74
        $region22: #{linear.1} parent=19 // pred_check_branch
          %168 = sbr.rel (%p166) target = $region24
        $region23: #{linear.1} parent=19 // pred_region
          %s169 = sand.u32 %s64, 1
          %s170 = scalar_lea.sflag [#allocation6], %s169
          %s171 = sand.u32 %s64, 1
          %s172 = smul.addr %s171, 64
          %s173 = scalar_lea.vmem [#allocation5], %s172
          %s175 = ssub.s32 1024, 1024
          %176 = vsyncadd %s170, %s175
          %s177 = smul.addr %s24, 64
          %s178 = scalar_lea.hbm %s1, %s177
          %s179 = sshll.u32 %s173, 4
          %s180 = int_to_ptr.vmem [resolvable:$true] %s179
          %185 = dma.hbm_to_vmem [thread:$0]  %s178, 1024, %s180, %s170, 256, 64, 4
        $region24: #{linear.1} parent=19 // pred_fallthru
          _
        // Predicated region
        $region25: #{linear.1} parent=19 // pred_check
          %p186 = pneg %p100
        $region26: #{linear.1} parent=19 // pred_check_branch
          %188 = sbr.rel (%p186) target = $region28
        $region27: #{linear.1} parent=19 // pred_region
          %p189 = scmp.lt.s32.totalorder %s24, 3
          %s190 = scalar_select %p189, %s24, 3
          %s191 = scalar_lea.vmem %s2, %s190
        $region28: #{linear.1} parent=19 // pred_fallthru
          _
      $region20: #{linear.1} parent=5 // pred_fallthru
        _
      %p192 = scmp.le.s32.totalorder 1, %s16
      %p193 = scmp.lt.s32.totalorder %s16, 5
      %p194 = pnand %p192, %p193
      %p195 = pneg %p194
      // Predicated region
      $region29: #{linear.1} parent=5 // pred_check
        _
      $region30: #{linear.1} parent=5 // pred_check_branch
        %197 = sbr.rel (%p194) target = $region32
      $region31: #{linear.1} parent=5 // pred_region
        %s198 = ssub.s32 %s16, 1
        // Predicated region
        $region33: #{linear.1} parent=31 // pred_check
          %p199 = pneg %p54
        $region34: #{linear.1} parent=31 // pred_check_branch
          %201 = sbr.rel (%p199) target = $region36
        $region35: #{linear.1} parent=31 // pred_region
          %202 = dma.done [#allocation3], 16
        $region36: #{linear.1} parent=31 // pred_fallthru
          _
        %s203 = sand.u32 %s67, 1
        %s204 = scalar_lea.sflag [#allocation6], %s203
        %s205 = sand.u32 %s67, 1
        %s206 = smul.addr %s205, 64
        %s207 = scalar_lea.vmem [#allocation5], %s206
        // Predicated region
        $region37: #{linear.1} parent=31 // pred_check
          %p208 = pneg %p80
        $region38: #{linear.1} parent=31 // pred_check_branch
          %210 = sbr.rel (%p208) target = $region40
        $region39: #{linear.1} parent=31 // pred_region
          %211 = dma.done %s204, 1024
        $region40: #{linear.1} parent=31 // pred_fallthru
          _
        %p212 = pneg %p54
        %p213 = pneg %p51
        %s214 = sand.u32 %s67, 1
        %s215 = scalar_lea.sflag [#allocation6], %s214
        %s216 = sand.u32 %s67, 1
        %s217 = smul.addr %s216, 64
        %s218 = scalar_lea.vmem [#allocation5], %s217
        %p219 = pneg %p80
        %p220 = pneg %p77
        %p221 = scmp.lt.s32.totalorder %s26, 3
        %s222 = scalar_select %p221, %s26, 3
        %s223 = scalar_lea.vmem %s2, %s222
        %p224 = pneg %p106
        %p225 = pneg %p103
        %p226 = pneg %p134
        %p227 = pneg %p131
        %s228 = sand.u32 %s121, 1
        %s229 = scalar_lea.sflag [#allocation4], %s228
        %s230 = sand.u32 %s121, 1
        %s231 = scalar_lea.vmem [#allocation7], %s230
        %p232 = scmp.lt.s32.totalorder %s26, 3
        %s233 = scalar_select %p232, %s26, 3
        %s234 = scalar_lea.vmem %s2, %s233
        %v236 = vld [vmem:[#allocation2] sm:$0x1]
        %v237 = vld [vmem:[%s207] sm:$0xf]
        %v238 = vld [vmem:[%s207 + $0x4] sm:$0xf]
        %v239 = vld [vmem:[%s207 + $0x8] sm:$0xf]
        %v240 = vld [vmem:[%s207 + $0xc] sm:$0xf]
        %v241 = vld [vmem:[%s207 + $0x10] sm:$0xf]
        %v242 = vld [vmem:[%s207 + $0x14] sm:$0xf]
        %v243 = vld [vmem:[%s207 + $0x18] sm:$0xf]
        %v244 = vld [vmem:[%s207 + $0x1c] sm:$0xf]
        %v245 = vld [vmem:[%s207 + $0x20] sm:$0xf]
        %v246 = vld [vmem:[%s207 + $0x24] sm:$0xf]
        %v247 = vld [vmem:[%s207 + $0x28] sm:$0xf]
        %v248 = vld [vmem:[%s207 + $0x2c] sm:$0xf]
        %v249 = vld [vmem:[%s207 + $0x30] sm:$0xf]
        %v250 = vld [vmem:[%s207 + $0x34] sm:$0xf]
        %v251 = vld [vmem:[%s207 + $0x38] sm:$0xf]
        %v252 = vld [vmem:[%s207 + $0x3c] sm:$0xf]
        %v253 = vld [vmem:[%s234] sm:$0x1]
        %v255 = vlaneseq
        %v256 = vshrl.u32 %v255, 7
        %v257 = vsub.s32 0, %v256
        %v258 = vrot.slane %v253, %v257
        %v276 = vunpack.c.l.b16 %v237
        %v277 = vunpack.c.l.b16 %v238
        %v278 = vunpack.c.l.b16 %v239
        %v279 = vunpack.c.l.b16 %v240
        %v280 = vunpack.c.l.b16 %v241
        %v281 = vunpack.c.l.b16 %v242
        %v282 = vunpack.c.l.b16 %v243
        %v283 = vunpack.c.l.b16 %v244
        %v284 = vunpack.c.l.b16 %v245
        %v285 = vunpack.c.l.b16 %v246
        %v286 = vunpack.c.l.b16 %v247
        %v287 = vunpack.c.l.b16 %v248
        %v288 = vunpack.c.l.b16 %v249
        %v289 = vunpack.c.l.b16 %v250
        %v290 = vunpack.c.l.b16 %v251
        %v291 = vunpack.c.l.b16 %v252
        %v292 = vpack.c.b16 %v277, %v276
        %v293 = vpack.c.b16 %v279, %v278
        %v294 = vpack.c.b16 %v281, %v280
        %v295 = vpack.c.b16 %v283, %v282
        %v296 = vpack.c.b16 %v285, %v284
        %v297 = vpack.c.b16 %v287, %v286
        %v298 = vpack.c.b16 %v289, %v288
        %v299 = vpack.c.b16 %v291, %v290
        %308 = vmatprep.subr.bf16.mxu0 0
        %309 = vmatpush1.bf16.msra.mxu0 %v292
        %310 = vmatprep.subr.bf16.mxu0 0
        %311 = vmatpush1.bf16.msra.mxu0 %v293
        %312 = vmatprep.subr.bf16.mxu0 0
        %313 = vmatpush1.bf16.msra.mxu0 %v294
        %314 = vmatprep.subr.bf16.mxu0 0
        %315 = vmatpush1.bf16.msra.mxu0 %v295
        %316 = vmatprep.subr.bf16.mxu0 0
        %317 = vmatpush1.bf16.msra.mxu0 %v296
        %318 = vmatprep.subr.bf16.mxu0 0
        %319 = vmatpush1.bf16.msra.mxu0 %v297
        %320 = vmatprep.subr.bf16.mxu0 0
        %321 = vmatpush1.bf16.msra.mxu0 %v298
        %322 = vmatprep.subr.bf16.mxu0 0
        %323 = vmatpush1.bf16.msra.mxu0 %v299
        %324 = vmatprep.subr.bf16.mxu0 0
        %325 = vmatpush1.bf16.msra.mxu0 0
        %326 = vmatprep.subr.bf16.mxu0 0
        %327 = vmatpush1.bf16.msra.mxu0 0
        %328 = vmatprep.subr.bf16.mxu0 0
        %329 = vmatpush1.bf16.msra.mxu0 0
        %330 = vmatprep.subr.bf16.mxu0 0
        %331 = vmatpush1.bf16.msra.mxu0 0
        %332 = vmatprep.subr.bf16.mxu0 0
        %333 = vmatpush1.bf16.msra.mxu0 0
        %334 = vmatprep.subr.bf16.mxu0 0
        %335 = vmatpush1.bf16.msra.mxu0 0
        %336 = vmatprep.subr.bf16.mxu0 0
        %337 = vmatpush1.bf16.msra.mxu0 0
        %338 = vmatprep.subr.bf16.mxu0 0
        %339 = vmatpush1.bf16.msra.mxu0 0
        %340 = vmatprep.mubr.bf16.mxu0 0
        %341 = vmatmul.mubr.bf16.gmra.mrb[0].mxu0 %v236
        %v342 = vpop.f32.mrb[0].mxu0
        %v343 = vadd.f32 %v258, %v342
        %v344 = vpop.f32.mrb[0].mxu0
        %v345 = vpop.f32.mrb[0].mxu0
        %v346 = vpop.f32.mrb[0].mxu0
        %347 = vdwg.mxu0
        %v348 = vxor.u32 %v343, 2147483648
        %v349 = vmul.f32 %v348, 1.442695
        %v350 = vpow.pop %v349
        %v351 = vadd.f32 %v350, 1.0
        %v352 = vrcp.pop %v351
        %v353 = vmul.f32 1.0, %v352
        %v354 = vmul.f32 %v343, %v353
        %v355 = vpack.c.bf16 %v354, %v354
        %356 = vst [vmem:[%s231] sm:$0x1] %v355
        %s357 = sand.u32 %s121, 1
        %s358 = scalar_lea.sflag [#allocation4], %s357
        %s359 = sand.u32 %s121, 1
        %s360 = scalar_lea.vmem [#allocation7], %s359
        // Predicated region
        $region41: #{linear.1} parent=31 // pred_check
          %p361 = pneg %p131
        $region42: #{linear.1} parent=31 // pred_check_branch
          %363 = sbr.rel (%p361) target = $region44
        $region43: #{linear.1} parent=31 // pred_region
          %s365 = ssub.s32 16, 16
          %366 = vsyncadd %s358, %s365
          %s367 = smul.addr %s25, 4
          %s368 = sadd.s32 %s26, %s367
          %s369 = smul.addr %s368, 16
          %s370 = scalar_lea.hbm %s3, %s369
          %s372 = sshll.u32 %s360, 4
          %s373 = int_to_ptr.vmem [resolvable:$true] %s372
          %375 = dma.vmem_to_hbm [thread:$0]  %s373, 16, %s370, %s358
        $region44: #{linear.1} parent=31 // pred_fallthru
          _
      $region32: #{linear.1} parent=5 // pred_fallthru
        _
      %p376 = scmp.le.s32.totalorder 2, %s16
      // Predicated region
      $region45: #{linear.1} parent=5 // pred_check
        %p377 = pneg %p376
      $region46: #{linear.1} parent=5 // pred_check_branch
        %379 = sbr.rel (%p377) target = $region48
      $region47: #{linear.1} parent=5 // pred_region
        %s380 = ssub.s32 %s16, 2
        // Predicated region
        $region49: #{linear.1} parent=47 // pred_check
          %p381 = pneg %p137
        $region50: #{linear.1} parent=47 // pred_check_branch
          %383 = sbr.rel (%p381) target = $region52
        $region51: #{linear.1} parent=47 // pred_region
          %s384 = sand.u32 %s122, 1
          %s385 = scalar_lea.sflag [#allocation4], %s384
          %s386 = sand.u32 %s122, 1
          %s387 = scalar_lea.vmem [#allocation7], %s386
          %388 = dma.done %s385, 16
        $region52: #{linear.1} parent=47 // pred_fallthru
          _
      $region48: #{linear.1} parent=5 // pred_fallthru
        _
    $region6: #{linear.1} parent=1 // loop_footer
      %s20 = sadd.s32 1, %s16
    $region7: #{linear.1} parent=1 // loop_footer_branch
      %15 = sbr.rel target = $region3
    $region8: #{linear.1} parent=1 // loop_exit
      _
    %389 = vsyncpa [#allocation3], 1
    %s390 = scalar_lea.sflag [#allocation3], 1
    %391 = vsyncpa %s390, 1
    %392 = vsyncpa [#allocation6], 1
    %s393 = scalar_lea.sflag [#allocation6], 1
    %394 = vsyncpa %s393, 1
    %395 = vsyncpa [#allocation4], 1
    %s396 = scalar_lea.sflag [#allocation4], 1
    %397 = vsyncpa %s396, 1

</llo_original>
